<compile_context>
chip_gen: v7x
topology: tpu7x:2x2x1
jax: 0.10.0
libtpu: 0.0.40
codegen_flags: <defaults>
</compile_context>

<pallas_src>
import functools

import jax
import jax.numpy as jnp
from jax import lax
from jax.experimental import pallas as pl
from jax.experimental.pallas import tpu as pltpu


def _cparams():
    # Explicit scoped-VMEM limit keeps the same block config portable across
    # v5e (16 MiB default) / v6e / v7x.
    return pltpu.CompilerParams(dimension_semantics=("parallel",),
                                vmem_limit_bytes=32 << 20)


# ---------------------------------------------------------------------------
# In-kernel helpers
# ---------------------------------------------------------------------------

def _store_halo_padded(o_ref, y):
    """Write y into the interior of a zero-halo-padded output block.

    One unmasked full-block zero store + one large interior store (instead of
    four thin masked edge stores that serialize on the vector-store slot).
    """
    Hy, Wy, _ = y.shape
    o_ref[...] = jnp.zeros(o_ref.shape, o_ref.dtype)
    o_ref[1:Hy + 1, 1:Wy + 1, :] = y.astype(o_ref.dtype)


def _maxpool2x2(y):
    """2x2 / stride-2 max pool on an (H, W, C) value.

    H-pair max first (leading, non-tiled dim -> pure VPU), then the W-pair max
    on the already-halved data (single small sublane regroup).
    """
    H, W, C = y.shape
    yh = jnp.max(y.reshape(H // 2, 2, W, C), axis=1)            # (H/2, W, C)
    return jnp.max(yh.reshape(H // 2, W // 2, 2, C), axis=2)    # (H/2, W/2, C)


def _conv_compute(x_ref, w_ref, b_ref, *, relu, single_dot):
    """3x3 SAME conv (+bias)(+ReLU) on a zero-halo-padded (H+2, W+2, Cin) block.

    single_dot=True : im2col concat along channels, one MXU dot with K=9*Cin.
    single_dot=False: 9 accumulated per-tap dots (K=Cin) into an f32 acc —
                      avoids materializing the 9x patches buffer in VMEM.
    MXU inputs are bf16, accumulation / bias / ReLU in f32.
    """
    Hp, Wp, Cin = x_ref.shape
    H, W = Hp - 2, Wp - 2
    Cout = b_ref.shape[-1]

    x = x_ref[...]                                             # one VMEM load

    if single_dot:
        cols = [x[kh:kh + H, kw:kw + W, :].astype(jnp.bfloat16)
                for kh in range(3) for kw in range(3)]
        patches = jnp.concatenate(cols, axis=-1).reshape(H * W, 9 * Cin)
        acc = jnp.dot(patches, w_ref[...], preferred_element_type=jnp.float32)
    else:
        acc = jnp.zeros((H * W, Cout), jnp.float32)
        for kh in range(3):
            for kw in range(3):
                tap = x[kh:kh + H, kw:kw + W, :].astype(jnp.bfloat16)
                tap = tap.reshape(H * W, Cin)
                acc = acc + jnp.dot(tap, w_ref[kh * 3 + kw],
                                    preferred_element_type=jnp.float32)

    acc = acc + b_ref[...]                                     # (1, Cout) bcast
    if relu:                                                   # free VPU epilogue
        acc = jnp.maximum(acc, 0.0)
    return acc.reshape(H, W, Cout)


# ---------------------------------------------------------------------------
# Kernels
# ---------------------------------------------------------------------------

def _fused_conv3x3_kernel(x_ref, w_ref, b_ref, *o_refs,
                          relu, pool, dual, single_dot):
    """Fused 3x3 SAME conv + bias [+ ReLU] [+ 2x2 max-pool] for one image.

    x_ref  : (H+2, W+2, Cin)        zero-halo-padded input (batch squeezed)
    w_ref  : (9*Cin, Cout) bf16     (single_dot) or (9, Cin, Cout) bf16
    b_ref  : (1, Cout) f32
    o_refs : single padded output, or (padded act, padded pooled act) if dual.
    """
    y = _conv_compute(x_ref, w_ref, b_ref, relu=relu, single_dot=single_dot)
    if dual:
        act_ref, pool_ref = o_refs
        _store_halo_padded(act_ref, y)
        _store_halo_padded(pool_ref, _maxpool2x2(y))
    else:
        (o_ref,) = o_refs
        if pool:
            y = _maxpool2x2(y)
        _store_halo_padded(o_ref, y)


def _relu_kernel(x_ref, o_ref):
    """Standalone ReLU on a lane-dense (Hp, Wp*C) 2-D block."""
    o_ref[...] = jnp.maximum(x_ref[...], 0.0)


def _maxpool2_kernel(x_ref, o_ref):
    """Standalone 2x2/stride-2 max pool for one image.

    x_ref: (H+2, W+2, C)      zero-halo-padded activation (interior sliced here)
    o_ref: (H/2+2, W/2+2, C)  zero-halo-padded output
    """
    Hp, Wp, C = x_ref.shape
    H, W = Hp - 2, Wp - 2
    x = x_ref[...]
    y = _maxpool2x2(x[1:H + 1, 1:W + 1, :])
    _store_halo_padded(o_ref, y)


# ---------------------------------------------------------------------------
# pallas_call wrappers (grid over batch; whole-image blocks at toy sizes)
# ---------------------------------------------------------------------------

def fused_conv3x3(x_pad, w, b, *, relu, pool=False, dual=False):
    """x_pad: (N, H+2, W+2, Cin) zero-halo-padded NHWC activation (f32).

    dual=True returns (padded conv/relu activation, padded pooled activation).
    """
    N, Hp, Wp, Cin = x_pad.shape
    H, W = Hp - 2, Wp - 2
    Cout = w.shape[-1]
    if pool or dual:
        assert H % 2 == 0 and W % 2 == 0

    # Bound the im2col blow-up: single K=9*Cin dot only while the bf16 patches
    # buffer is tiny and Cin is small; otherwise 9 accumulated per-tap dots.
    patches_bytes = H * W * 9 * Cin * 2
    single_dot = (Cin < 32) and (patches_bytes <= (2 << 20))

    if single_dot:
        w_in = w.reshape(9 * Cin, Cout).astype(jnp.bfloat16)
        w_spec = pl.BlockSpec((9 * Cin, Cout), lambda n: (0, 0))
    else:
        w_in = w.reshape(9, Cin, Cout).astype(jnp.bfloat16)
        w_spec = pl.BlockSpec((9, Cin, Cout), lambda n: (0, 0, 0))
    b_in = b.reshape(1, Cout).astype(jnp.float32)

    kernel = functools.partial(_fused_conv3x3_kernel, relu=relu, pool=pool,
                               dual=dual, single_dot=single_dot)

    if dual:
        out_shape = (
            jax.ShapeDtypeStruct((N, H + 2, W + 2, Cout), jnp.float32),
            jax.ShapeDtypeStruct((N, H // 2 + 2, W // 2 + 2, Cout), jnp.float32),
        )
        out_specs = (
            pl.BlockSpec((None, H + 2, W + 2, Cout), lambda n: (n, 0, 0, 0)),
            pl.BlockSpec((None, H // 2 + 2, W // 2 + 2, Cout),
                         lambda n: (n, 0, 0, 0)),
        )
    else:
        Ho, Wo = (H // 2, W // 2) if pool else (H, W)
        out_shape = jax.ShapeDtypeStruct((N, Ho + 2, Wo + 2, Cout), jnp.float32)
        out_specs = pl.BlockSpec((None, Ho + 2, Wo + 2, Cout),
                                 lambda n: (n, 0, 0, 0))

    return pl.pallas_call(
        kernel,
        out_shape=out_shape,
        grid=(N,),
        in_specs=[
            pl.BlockSpec((None, Hp, Wp, Cin), lambda n: (n, 0, 0, 0)),
            w_spec,
            pl.BlockSpec((1, Cout), lambda n: (0, 0)),
        ],
        out_specs=out_specs,
        compiler_params=_cparams(),
    )(x_pad, w_in, b_in)


def relu_padded(x_pad):
    """Standalone ReLU on a zero-halo-padded activation (border stays zero)."""
    N, Hp, Wp, C = x_pad.shape
    x2 = x_pad.reshape(N, Hp, Wp * C)      # free view: >=8 sublanes, lane-dense
    y = pl.pallas_call(
        _relu_kernel,
        out_shape=jax.ShapeDtypeStruct(x2.shape, x2.dtype),
        grid=(N,),
        in_specs=[pl.BlockSpec((None, Hp, Wp * C), lambda n: (n, 0, 0))],
        out_specs=pl.BlockSpec((None, Hp, Wp * C), lambda n: (n, 0, 0)),
        compiler_params=_cparams(),
    )(x2)
    return y.reshape(x_pad.shape)


def maxpool2_padded(x_pad):
    """Standalone 2x2/s2 max-pool on a zero-halo-padded activation.

    Interior slice + pooling happen in-kernel on VMEM data (no wrapper-level
    slice+reshape HBM copy).
    """
    N, Hp, Wp, C = x_pad.shape
    H, W = Hp - 2, Wp - 2
    assert H % 2 == 0 and W % 2 == 0
    return pl.pallas_call(
        _maxpool2_kernel,
        out_shape=jax.ShapeDtypeStruct((N, H // 2 + 2, W // 2 + 2, C),
                                       x_pad.dtype),
        grid=(N,),
        in_specs=[pl.BlockSpec((None, Hp, Wp, C), lambda n: (n, 0, 0, 0))],
        out_specs=pl.BlockSpec((None, H // 2 + 2, W // 2 + 2, C),
                               lambda n: (n, 0, 0, 0)),
        compiler_params=_cparams(),
    )(x_pad)


# ---------------------------------------------------------------------------
# _PerceptualNetwork equivalent
# ---------------------------------------------------------------------------

class PerceptualNetworkPallas:
    """JAX/Pallas equivalent of `_PerceptualNetwork`.

    `network` is a list of layer specs mirroring an nn.Sequential:
        ("conv", w_hwio, b) | ("relu",) | ("maxpool",)
    Parameters are frozen by construction (no gradients are taken).
    Conv layers are fused with a following ReLU and, when possible, a
    following 2x2 max-pool; if the pre-pool activation is collected the kernel
    emits both tensors (dual output) instead of running a standalone pool.
    """

    def __init__(self, network, layer_name_mapping, layers):
        self.network = network
        self.layer_name_mapping = layer_name_mapping
        self.layers = layers

    def _is_collected(self, idx):
        return self.layer_name_mapping.get(idx, None) in self.layers

    def _collect_if_needed(self, output, idx, x_pad):
        name = self.layer_name_mapping.get(idx, None)
        if name in self.layers:
            inner = x_pad[:, 1:-1, 1:-1, :]      # strip halo
            output[name] = jnp.transpose(inner, (0, 3, 1, 2))   # back to NCHW

    def __call__(self, x_nchw):
        # NCHW (PyTorch convention) -> NHWC for the kernels; pad once.  After
        # this, every activation stays zero-halo-padded as (N, H+2, W+2, C).
        x = jnp.transpose(x_nchw, (0, 2, 3, 1)).astype(jnp.float32)
        x = jnp.pad(x, ((0, 0), (1, 1), (1, 1), (0, 0)))

        output = {}
        n = len(self.network)
        i = 0
        while i < n:
            kind = self.network[i][0]
            if kind == "conv":
                _, w, b = self.network[i]
                fuse_relu = (i + 1 < n
                             and self.network[i + 1][0] == "relu"
                             and not self._is_collected(i))
                last = i + 1 if fuse_relu else i
                pool_next = (last + 1 < n
                             and self.network[last + 1][0] == "maxpool")
                if pool_next and self._is_collected(last):
                    # collected pre-pool activation + pooled activation from
                    # ONE kernel (no extra HBM round-trip of the activation)
                    x_act, x = fused_conv3x3(x, w, b, relu=fuse_relu, dual=True)
                    self._collect_if_needed(output, last, x_act)
                    last += 1
                elif pool_next:
                    x = fused_conv3x3(x, w, b, relu=fuse_relu, pool=True)
                    last += 1
                else:
                    x = fused_conv3x3(x, w, b, relu=fuse_relu, pool=False)
                self._collect_if_needed(output, last, x)
                i = last + 1
            elif kind == "relu":
                x = relu_padded(x)
                self._collect_if_needed(output, i, x)
                i += 1
            elif kind == "maxpool":
                x = maxpool2_padded(x)
                self._collect_if_needed(output, i, x)
                i += 1
            else:
                raise ValueError(f"unknown layer kind: {kind}")
        return output


# ---------------------------------------------------------------------------
# Deterministic synthetic network + pure-JAX reference
# ---------------------------------------------------------------------------

def conv_params(k, ci, co):
    kw_, kb_ = jax.random.split(k)
    w = jax.random.normal(kw_, (3, 3, ci, co), jnp.float32)
    w = w * (1.0 / (3.0 * 3.0 * ci) ** 0.5)
    b = 0.01 * jax.random.normal(kb_, (co,), jnp.float32)
    return w, b


def make_network(key, cin):
    k0, k1, k2 = jax.random.split(key, 3)
    w0, b0 = conv_params(k0, cin, 32)
    w2, b2 = conv_params(k1, 32, 32)
    w5, b5 = conv_params(k2, 32, 64)
    return [
        ("conv", w0, b0),   # 0
        ("relu",),          # 1  -> "relu1_1" (collected)
        ("conv", w2, b2),   # 2
        ("relu",),          # 3  -> "relu1_2" (mapped, not collected)
        ("maxpool",),       # 4  (fused into the conv-2 group)
        ("conv", w5, b5),   # 5
        ("relu",),          # 6  -> "relu2_1" (collected -> dual-output kernel)
        ("maxpool",),       # 7  -> "pool2"   (collected, from the same kernel)
    ]


def reference_forward(x_nchw, network, layer_name_mapping, layers):
    """Pure-JAX (XLA, f32) reference for validation."""
    x = jnp.transpose(x_nchw, (0, 2, 3, 1)).astype(jnp.float32)
    out = {}
    for i, layer in enumerate(network):
        if layer[0] == "conv":
            _, w, b = layer
            x = lax.conv_general_dilated(
                x, w, window_strides=(1, 1), padding="SAME",
                dimension_numbers=("NHWC", "HWIO", "NHWC")) + b
        elif layer[0] == "relu":
            x = jnp.maximum(x, 0.0)
        elif layer[0] == "maxpool":
            x = lax.reduce_window(
                x, -jnp.inf, lax.max,
                window_dimensions=(1, 2, 2, 1),
                window_strides=(1, 2, 2, 1), padding="VALID")
        name = layer_name_mapping.get(i, None)
        if name in layers:
            out[name] = jnp.transpose(x, (0, 3, 1, 2))
    return out


# ---------------------------------------------------------------------------

if __name__ == "__main__":
    key = jax.random.PRNGKey(0)
    k_net, k_x = jax.random.split(key)

    # Input follows the PyTorch NCHW convention.
    x = jax.random.normal(k_x, (2, 4, 16, 16), jnp.float32)

    # Main VGG-like network (exercises fused conv+relu, fused conv+relu+pool,
    # the dual-output kernel, and both the single-dot and per-tap conv paths).
    layer_name_mapping = {1: "relu1_1", 3: "relu1_2", 6: "relu2_1", 7: "pool2"}
    layers = ("relu1_1", "relu2_1", "pool2")
    network = make_network(k_net, cin=4)
    model = PerceptualNetworkPallas(network, layer_name_mapping, layers)

    out = jax.block_until_ready(model(x))
    ref = reference_forward(x, network, layer_name_mapping, layers)
    assert set(out.keys()) == set(layers)
    # bf16 MXU inputs (f32 accumulation) -> tolerance loosened vs f32-everywhere.
    TOL = 3e-2
    for name in layers:
        assert out[name].shape == ref[name].shape, (name, out[name].shape)
        err = float(jnp.max(jnp.abs(out[name] - ref[name])))
        assert err < TOL, f"{name}: max abs err {err}"

    # Secondary network exercising the unfused-conv, standalone-ReLU and
    # standalone-maxpool paths (conv output is collected, so nothing fuses).
    w0, b0 = network[0][1], network[0][2]
    network2 = [("conv", w0, b0), ("relu",), ("maxpool",)]
    mapping2 = {0: "conv0", 2: "pool_a"}
    layers2 = ("conv0", "pool_a")
    model2 = PerceptualNetworkPallas(network2, mapping2, layers2)

    out2 = jax.block_until_ready(model2(x))
    ref2 = reference_forward(x, network2, mapping2, layers2)
    assert set(out2.keys()) == set(layers2)
    for name in layers2:
        assert out2[name].shape == ref2[name].shape, (name, out2[name].shape)
        err = float(jnp.max(jnp.abs(out2[name] - ref2[name])))
        assert err < TOL, f"{name}: max abs err {err}"

    print("KERNEL_OK")
</pallas_src>

<mosaic_0001>
module attributes {stable_mosaic.version = 11 : i64} {
  func.func @_fused_conv3x3_kernel(%arg0: i32, %arg1: memref<1x18x18x4xf32, #tpu.memory_space<vmem>>, %arg2: memref<36x32xbf16, #tpu.memory_space<vmem>>, %arg3: memref<1x32xf32, #tpu.memory_space<vmem>>, %arg4: memref<1x18x18x32xf32, #tpu.memory_space<vmem>>) attributes {dimension_semantics = [#tpu.dimension_semantics<parallel>], iteration_bounds = array<i64: 2>, scalar_prefetch = 0 : i64, scratch_operands = 0 : i64, tpu.core_type = #tpu.core_type<tc>, window_params = [{transform_indices = @transform_0, window_bounds = array<i64: 1, 18, 18, 4>}, {pipeline_mode = #tpu.pipeline_mode<synchronous>, transform_indices = @transform_1, window_bounds = array<i64: 36, 32>}, {pipeline_mode = #tpu.pipeline_mode<synchronous>, transform_indices = @transform_2, window_bounds = array<i64: 1, 32>}, {transform_indices = @transform_3, window_bounds = array<i64: 1, 18, 18, 32>}]} {
    %c0 = arith.constant 0 : index
    %c0_0 = arith.constant 0 : index
    %c0_1 = arith.constant 0 : index
    %c0_2 = arith.constant 0 : index
    %0 = vector.load %arg1[%c0, %c0_0, %c0_1, %c0_2] : memref<1x18x18x4xf32, #tpu.memory_space<vmem>>, vector<1x18x18x4xf32>
    %1 = vector.shape_cast %0 : vector<1x18x18x4xf32> to vector<18x18x4xf32>
    %2 = vector.extract_strided_slice %1 {offsets = [0, 0, 0], sizes = [16, 16, 4], strides = [1, 1, 1]} : vector<18x18x4xf32> to vector<16x16x4xf32>
    %3 = arith.truncf %2 : vector<16x16x4xf32> to vector<16x16x4xbf16>
    %4 = vector.extract_strided_slice %1 {offsets = [0, 1, 0], sizes = [16, 16, 4], strides = [1, 1, 1]} : vector<18x18x4xf32> to vector<16x16x4xf32>
    %5 = arith.truncf %4 : vector<16x16x4xf32> to vector<16x16x4xbf16>
    %6 = vector.extract_strided_slice %1 {offsets = [0, 2, 0], sizes = [16, 16, 4], strides = [1, 1, 1]} : vector<18x18x4xf32> to vector<16x16x4xf32>
    %7 = arith.truncf %6 : vector<16x16x4xf32> to vector<16x16x4xbf16>
    %8 = vector.extract_strided_slice %1 {offsets = [1, 0, 0], sizes = [16, 16, 4], strides = [1, 1, 1]} : vector<18x18x4xf32> to vector<16x16x4xf32>
    %9 = arith.truncf %8 : vector<16x16x4xf32> to vector<16x16x4xbf16>
    %10 = vector.extract_strided_slice %1 {offsets = [1, 1, 0], sizes = [16, 16, 4], strides = [1, 1, 1]} : vector<18x18x4xf32> to vector<16x16x4xf32>
    %11 = arith.truncf %10 : vector<16x16x4xf32> to vector<16x16x4xbf16>
    %12 = vector.extract_strided_slice %1 {offsets = [1, 2, 0], sizes = [16, 16, 4], strides = [1, 1, 1]} : vector<18x18x4xf32> to vector<16x16x4xf32>
    %13 = arith.truncf %12 : vector<16x16x4xf32> to vector<16x16x4xbf16>
    %14 = vector.extract_strided_slice %1 {offsets = [2, 0, 0], sizes = [16, 16, 4], strides = [1, 1, 1]} : vector<18x18x4xf32> to vector<16x16x4xf32>
    %15 = arith.truncf %14 : vector<16x16x4xf32> to vector<16x16x4xbf16>
    %16 = vector.extract_strided_slice %1 {offsets = [2, 1, 0], sizes = [16, 16, 4], strides = [1, 1, 1]} : vector<18x18x4xf32> to vector<16x16x4xf32>
    %17 = arith.truncf %16 : vector<16x16x4xf32> to vector<16x16x4xbf16>
    %18 = vector.extract_strided_slice %1 {offsets = [2, 2, 0], sizes = [16, 16, 4], strides = [1, 1, 1]} : vector<18x18x4xf32> to vector<16x16x4xf32>
    %19 = arith.truncf %18 : vector<16x16x4xf32> to vector<16x16x4xbf16>
    %20 = tpu.concatenate %3, %5, %7, %9, %11, %13, %15, %17, %19 in 2 : vector<16x16x4xbf16>, vector<16x16x4xbf16>, vector<16x16x4xbf16>, vector<16x16x4xbf16>, vector<16x16x4xbf16>, vector<16x16x4xbf16>, vector<16x16x4xbf16>, vector<16x16x4xbf16>, vector<16x16x4xbf16> -> vector<16x16x36xbf16>
    %21 = vector.shape_cast %20 : vector<16x16x36xbf16> to vector<256x36xbf16>
    %c0_3 = arith.constant 0 : index
    %c0_4 = arith.constant 0 : index
    %22 = vector.load %arg2[%c0_3, %c0_4] : memref<36x32xbf16, #tpu.memory_space<vmem>>, vector<36x32xbf16>
    %cst = arith.constant dense<0.000000e+00> : vector<256x32xf32>
    %23 = tpu.matmul %21, %22, %cst {dimension_numbers = #tpu.dot_dimension_numbers<[1], [0], [0], [1], [0, 0, 1, 1], [], []>} : vector<256x36xbf16>, vector<36x32xbf16>, vector<256x32xf32> -> vector<256x32xf32>
    %c0_5 = arith.constant 0 : index
    %c0_6 = arith.constant 0 : index
    %24 = vector.load %arg3[%c0_5, %c0_6] : memref<1x32xf32, #tpu.memory_space<vmem>>, vector<1x32xf32>
    %25 = vector.broadcast %24 : vector<1x32xf32> to vector<256x32xf32>
    %26 = arith.addf %23, %25 : vector<256x32xf32>
    %cst_7 = arith.constant 0.000000e+00 : f32
    %27 = vector.broadcast %cst_7 : f32 to vector<256x32xf32>
    %28 = arith.maximumf %26, %27 : vector<256x32xf32>
    %29 = vector.shape_cast %28 : vector<256x32xf32> to vector<16x16x32xf32>
    %cst_8 = arith.constant 0.000000e+00 : f32
    %30 = vector.broadcast %cst_8 : f32 to vector<18x18x32xf32>
    %c0_9 = arith.constant 0 : index
    %c0_10 = arith.constant 0 : index
    %c0_11 = arith.constant 0 : index
    %c0_12 = arith.constant 0 : index
    %31 = vector.load %arg4[%c0_9, %c0_10, %c0_11, %c0_12] : memref<1x18x18x32xf32, #tpu.memory_space<vmem>>, vector<1x18x18x32xf32>
    %32 = vector.shape_cast %31 : vector<1x18x18x32xf32> to vector<18x18x32xf32>
    %33 = vector.shape_cast %30 : vector<18x18x32xf32> to vector<1x18x18x32xf32>
    tpu.vector_store %arg4[%c0_9, %c0_10, %c0_11, %c0_12], %33 {strides = array<i32>} : memref<1x18x18x32xf32, #tpu.memory_space<vmem>>, vector<1x18x18x32xf32>,
    %c0_13 = arith.constant 0 : index
    %c1 = arith.constant 1 : index
    %c1_14 = arith.constant 1 : index
    %c0_15 = arith.constant 0 : index
    %34 = vector.load %arg4[%c0_13, %c1, %c1_14, %c0_15] : memref<1x18x18x32xf32, #tpu.memory_space<vmem>>, vector<1x16x16x32xf32>
    %35 = vector.shape_cast %34 : vector<1x16x16x32xf32> to vector<16x16x32xf32>
    %36 = vector.shape_cast %29 : vector<16x16x32xf32> to vector<1x16x16x32xf32>
    tpu.vector_store %arg4[%c0_13, %c1, %c1_14, %c0_15], %36 {strides = array<i32>} : memref<1x18x18x32xf32, #tpu.memory_space<vmem>>, vector<1x16x16x32xf32>,
    return
  }
  func.func @transform_0(%arg0: i32) -> (i32, i32, i32, i32) {
    %c0_i32 = arith.constant 0 : i32
    %c0_i32_0 = arith.constant 0 : i32
    %c0_i32_1 = arith.constant 0 : i32
    %c0_i32_2 = arith.constant 0 : i32
    return %arg0, %c0_i32, %c0_i32_0, %c0_i32_1 : i32, i32, i32, i32
  }
  func.func @transform_1(%arg0: i32) -> (i32, i32) {
    %c0_i32 = arith.constant 0 : i32
    %c0_i32_0 = arith.constant 0 : i32
    %c0_i32_1 = arith.constant 0 : i32
    return %c0_i32, %c0_i32_0 : i32, i32
  }
  func.func @transform_2(%arg0: i32) -> (i32, i32) {
    %c0_i32 = arith.constant 0 : i32
    %c0_i32_0 = arith.constant 0 : i32
    %c0_i32_1 = arith.constant 0 : i32
    return %c0_i32, %c0_i32_0 : i32, i32
  }
  func.func @transform_3(%arg0: i32) -> (i32, i32, i32, i32) {
    %c0_i32 = arith.constant 0 : i32
    %c0_i32_0 = arith.constant 0 : i32
    %c0_i32_1 = arith.constant 0 : i32
    %c0_i32_2 = arith.constant 0 : i32
    return %arg0, %c0_i32, %c0_i32_0, %c0_i32_1 : i32, i32, i32, i32
  }
}

</mosaic_0001>

<llo_original>
// kernel: tpu_custom_call.1
$region0: #{tpu_custom_call.1}
  #allocation0 [shape = 'u32[]', space=smem, size = 0x4, offset = 0x4, fixed_abs, tag = 'smem constant byte address 0x4 - core index']
  #allocation1 [shape = 'u32[144,128]{1,0:T(1,128)}', space=vmem, size = 0x12000, scoped, tag = 'internal scratch']
  %s0 = inlined_call_operand.vmem [shape: f32[2,18,18,4], index: 0, kind: input, shape index: {}]
  %s1 = inlined_call_operand.vmem [shape: bf16[36,32], index: 1, kind: input, shape index: {}]
  %s2 = inlined_call_operand.vmem [shape: f32[1,32], index: 2, kind: input, shape index: {}]
  %s3 = inlined_call_operand.vmem [shape: f32[2,18,18,32], index: 3, kind: output, shape index: {}]
  %s4 = sld [smem:[#allocation0]]
  $region45: #{tpu_custom_call.1} parent=0
    _
  %s6 = ssub.s32 1, %s4
  %s7 = scalar_select 0, %s6, %s4
  loop: start=0, step=1, limit=4
  $region2: #{tpu_custom_call.1} parent=0 // loop_pre_header
    _
  $region3: #{tpu_custom_call.1} parent=0 // loop_header
    %s9 = sphi 0, %s13
    %p10 = scmp.ge.s32.totalorder %s9, 4
    %s19 = sphi 0, %s21
    %s22 = sphi 0, %s19
    %s23 = sphi 0, %s22
    %s39 = sphi 0, %s23
    %s43 = sphi 0, %s43
    %s45 = sphi 0, %s43
    %s46 = sphi 0, %s45
    %s60 = sphi 0, %s46
    %s64 = sphi 0, %s64
    %s66 = sphi 0, %s64
    %s67 = sphi 0, %s66
    %s81 = sphi 0, %s67
    %s87 = sphi 0, %s89
    %s90 = sphi 0, %s87
    %s91 = sphi 0, %s90
    %s107 = sphi 0, %s91
  $region4: #{tpu_custom_call.1} parent=0 // loop_header_branch
    %12 = sbr.rel (%p10) target = $region8
  $region5: #{tpu_custom_call.1} parent=0 // loop_body
    %s14 = ssub.s32 %s9, 1
    %s15 = ssub.s32 %s9, 2
    %s16 = sadd.s32 %s9, 1
    %s17 = ssub.s32 %s9, %s16
    %p18 = scmp.eq.s32.totalorder %s17, 0
    %s20 = sadd.s32 %s19, 1
    %s21 = scalar_select %p18, %s19, %s20
    %p24 = pneg %p18
    %p25 = scmp.eq.s32.totalorder %s9, 1
    %p26 = por %p24, %p25
    %p27 = scmp.ne.s32.totalorder %s19, %s22
    %p28 = scmp.eq.s32.totalorder %s9, 0
    %p29 = por %p27, %p28
    %p30 = scmp.ne.s32.totalorder %s19, %s22
    %p31 = scmp.eq.s32.totalorder %s14, 1
    %p32 = por %p30, %p31
    %p33 = scmp.ne.s32.totalorder %s22, %s23
    %p34 = scmp.eq.s32.totalorder %s14, 0
    %p35 = por %p33, %p34
    %p36 = scmp.ne.s32.totalorder %s22, %s23
    %p37 = scmp.eq.s32.totalorder %s15, 1
    %p38 = por %p36, %p37
    %p40 = scmp.ne.s32.totalorder %s23, %s39
    %p41 = scmp.eq.s32.totalorder %s15, 0
    %p42 = por %p40, %p41
    %s44 = sadd.s32 %s43, 1
    %p47 = scmp.eq.s32.totalorder %s9, 1
    %p48 = scmp.ne.s32.totalorder %s43, %s45
    %p49 = scmp.eq.s32.totalorder %s9, 0
    %p50 = por %p48, %p49
    %p51 = scmp.ne.s32.totalorder %s43, %s45
    %p52 = scmp.eq.s32.totalorder %s14, 1
    %p53 = por %p51, %p52
    %p54 = scmp.ne.s32.totalorder %s45, %s46
    %p55 = scmp.eq.s32.totalorder %s14, 0
    %p56 = por %p54, %p55
    %p57 = scmp.ne.s32.totalorder %s45, %s46
    %p58 = scmp.eq.s32.totalorder %s15, 1
    %p59 = por %p57, %p58
    %p61 = scmp.ne.s32.totalorder %s46, %s60
    %p62 = scmp.eq.s32.totalorder %s15, 0
    %p63 = por %p61, %p62
    %s65 = sadd.s32 %s64, 1
    %p68 = scmp.eq.s32.totalorder %s9, 1
    %p69 = scmp.ne.s32.totalorder %s64, %s66
    %p70 = scmp.eq.s32.totalorder %s9, 0
    %p71 = por %p69, %p70
    %p72 = scmp.ne.s32.totalorder %s64, %s66
    %p73 = scmp.eq.s32.totalorder %s14, 1
    %p74 = por %p72, %p73
    %p75 = scmp.ne.s32.totalorder %s66, %s67
    %p76 = scmp.eq.s32.totalorder %s14, 0
    %p77 = por %p75, %p76
    %p78 = scmp.ne.s32.totalorder %s66, %s67
    %p79 = scmp.eq.s32.totalorder %s15, 1
    %p80 = por %p78, %p79
    %p82 = scmp.ne.s32.totalorder %s67, %s81
    %p83 = scmp.eq.s32.totalorder %s15, 0
    %p84 = por %p82, %p83
    %s85 = ssub.s32 %s9, %s16
    %p86 = scmp.eq.s32.totalorder %s85, 0
    %s88 = sadd.s32 %s87, 1
    %s89 = scalar_select %p86, %s87, %s88
    %p92 = pneg %p86
    %p93 = scmp.eq.s32.totalorder %s9, 1
    %p94 = por %p92, %p93
    %p95 = scmp.ne.s32.totalorder %s87, %s90
    %p96 = scmp.eq.s32.totalorder %s9, 0
    %p97 = por %p95, %p96
    %p98 = scmp.ne.s32.totalorder %s87, %s90
    %p99 = scmp.eq.s32.totalorder %s14, 1
    %p100 = por %p98, %p99
    %p101 = scmp.ne.s32.totalorder %s90, %s91
    %p102 = scmp.eq.s32.totalorder %s14, 0
    %p103 = por %p101, %p102
    %p104 = scmp.ne.s32.totalorder %s90, %s91
    %p105 = scmp.eq.s32.totalorder %s15, 1
    %p106 = por %p104, %p105
    %p108 = scmp.ne.s32.totalorder %s91, %s107
    %p109 = scmp.eq.s32.totalorder %s15, 0
    %p110 = por %p108, %p109
    %p111 = scmp.le.s32.totalorder 1, %s9
    %p112 = scmp.lt.s32.totalorder %s9, 3
    %p113 = pnand %p111, %p112
    %p114 = pneg %p113
    // Predicated region
    $region9: #{tpu_custom_call.1} parent=5 // pred_check
      _
    $region10: #{tpu_custom_call.1} parent=5 // pred_check_branch
      %116 = sbr.rel (%p113) target = $region12
    $region11: #{tpu_custom_call.1} parent=5 // pred_region
      %s117 = ssub.s32 %s9, 1
      // Predicated region
      $region13: #{tpu_custom_call.1} parent=11 // pred_check
        %p118 = pneg %p56
      $region14: #{tpu_custom_call.1} parent=11 // pred_check_branch
        %120 = sbr.rel (%p118) target = $region16
      $region15: #{tpu_custom_call.1} parent=11 // pred_region
        _
      $region16: #{tpu_custom_call.1} parent=11 // pred_fallthru
        _
      // Predicated region
      $region17: #{tpu_custom_call.1} parent=11 // pred_check
        %p121 = pneg %p77
      $region18: #{tpu_custom_call.1} parent=11 // pred_check_branch
        %123 = sbr.rel (%p121) target = $region20
      $region19: #{tpu_custom_call.1} parent=11 // pred_region
        _
      $region20: #{tpu_custom_call.1} parent=11 // pred_fallthru
        _
    $region12: #{tpu_custom_call.1} parent=5 // pred_fallthru
      _
    %p124 = scmp.lt.s32.totalorder %s9, 2
    // Predicated region
    $region21: #{tpu_custom_call.1} parent=5 // pred_check
      %p125 = pneg %p124
    $region22: #{tpu_custom_call.1} parent=5 // pred_check_branch
      %127 = sbr.rel (%p125) target = $region24
    $region23: #{tpu_custom_call.1} parent=5 // pred_region
      // Predicated region
      $region25: #{tpu_custom_call.1} parent=23 // pred_check
        %p128 = pneg %p29
      $region26: #{tpu_custom_call.1} parent=23 // pred_check_branch
        %130 = sbr.rel (%p128) target = $region28
      $region27: #{tpu_custom_call.1} parent=23 // pred_region
        %p131 = scmp.lt.s32.totalorder %s9, 1
        %s132 = scalar_select %p131, %s9, 1
        %s133 = smul.addr %s132, 54
        %s134 = smul.addr %s133, 8
        %s135 = scalar_lea.vmem %s0, %s134
      $region28: #{tpu_custom_call.1} parent=23 // pred_fallthru
        _
    $region24: #{tpu_custom_call.1} parent=5 // pred_fallthru
      _
    %p136 = scmp.le.s32.totalorder 1, %s9
    %p137 = scmp.lt.s32.totalorder %s9, 3
    %p138 = pnand %p136, %p137
    %p139 = pneg %p138
    // Predicated region
    $region29: #{tpu_custom_call.1} parent=5 // pred_check
      _
    $region30: #{tpu_custom_call.1} parent=5 // pred_check_branch
      %141 = sbr.rel (%p138) target = $region32
    $region31: #{tpu_custom_call.1} parent=5 // pred_region
      %s142 = ssub.s32 %s9, 1
      %p143 = scmp.lt.s32.totalorder %s14, 1
      %s144 = scalar_select %p143, %s14, 1
      %s145 = smul.addr %s144, 54
      %s146 = smul.addr %s145, 8
      %s147 = scalar_lea.vmem %s0, %s146
      %p148 = pneg %p35
      %p149 = pneg %p32
      %p150 = pneg %p56
      %p151 = pneg %p53
      %p152 = pneg %p77
      %p153 = pneg %p74
      %p154 = pneg %p103
      %p155 = pneg %p100
      %p156 = scmp.lt.s32.totalorder %s14, 1
      %s157 = scalar_select %p156, %s14, 1
      %s158 = smul.addr %s157, 54
      %s159 = smul.addr %s158, 8
      %s160 = scalar_lea.vmem %s3, %s159
      %p161 = scmp.lt.s32.totalorder %s14, 1
      %s162 = scalar_select %p161, %s14, 1
      %s163 = smul.addr %s162, 54
      %s164 = smul.addr %s163, 8
      %s165 = scalar_lea.vmem %s0, %s164
      %p166 = scmp.lt.s32.totalorder %s14, 1
      %s167 = scalar_select %p166, %s14, 1
      %s168 = smul.addr %s167, 54
      %s169 = smul.addr %s168, 8
      %s170 = scalar_lea.vmem %s3, %s169
      %v172 = vld [vmem:[%s165] sm:$0xff]
      %v173 = vld [vmem:[%s165 + $0x8] sm:$0xff]
      %v174 = vld [vmem:[%s165 + $0x10] sm:$0x3]
      %v175 = vld [vmem:[%s165 + $0x18] sm:$0xff]
      %v176 = vld [vmem:[%s165 + $0x20] sm:$0xff]
      %v177 = vld [vmem:[%s165 + $0x28] sm:$0x3]
      %v178 = vld [vmem:[%s165 + $0x30] sm:$0xff]
      %v179 = vld [vmem:[%s165 + $0x38] sm:$0xff]
      %v180 = vld [vmem:[%s165 + $0x40] sm:$0x3]
      %v181 = vld [vmem:[%s165 + $0x48] sm:$0xff]
      %v182 = vld [vmem:[%s165 + $0x50] sm:$0xff]
      %v183 = vld [vmem:[%s165 + $0x58] sm:$0x3]
      %v184 = vld [vmem:[%s165 + $0x60] sm:$0xff]
      %v185 = vld [vmem:[%s165 + $0x68] sm:$0xff]
      %v186 = vld [vmem:[%s165 + $0x70] sm:$0x3]
      %v187 = vld [vmem:[%s165 + $0x78] sm:$0xff]
      %v188 = vld [vmem:[%s165 + $0x80] sm:$0xff]
      %v189 = vld [vmem:[%s165 + $0x88] sm:$0x3]
      %v190 = vld [vmem:[%s165 + $0x90] sm:$0xff]
      %v191 = vld [vmem:[%s165 + $0x98] sm:$0xff]
      %v192 = vld [vmem:[%s165 + $0xa0] sm:$0x3]
      %v193 = vld [vmem:[%s165 + $0xa8] sm:$0xff]
      %v194 = vld [vmem:[%s165 + $0xb0] sm:$0xff]
      %v195 = vld [vmem:[%s165 + $0xb8] sm:$0x3]
      %v196 = vld [vmem:[%s165 + $0xc0] sm:$0xff]
      %v197 = vld [vmem:[%s165 + $0xc8] sm:$0xff]
      %v198 = vld [vmem:[%s165 + $0xd0] sm:$0x3]
      %v199 = vld [vmem:[%s165 + $0xd8] sm:$0xff]
      %v200 = vld [vmem:[%s165 + $0xe0] sm:$0xff]
      %v201 = vld [vmem:[%s165 + $0xe8] sm:$0x3]
      %v202 = vld [vmem:[%s165 + $0xf0] sm:$0xff]
      %v203 = vld [vmem:[%s165 + $0xf8] sm:$0xff]
      %v204 = vld [vmem:[%s165 + $0x100] sm:$0x3]
      %v205 = vld [vmem:[%s165 + $0x108] sm:$0xff]
      %v206 = vld [vmem:[%s165 + $0x110] sm:$0xff]
      %v207 = vld [vmem:[%s165 + $0x118] sm:$0x3]
      %v208 = vld [vmem:[%s165 + $0x120] sm:$0xff]
      %v209 = vld [vmem:[%s165 + $0x128] sm:$0xff]
      %v210 = vld [vmem:[%s165 + $0x130] sm:$0x3]
      %v211 = vld [vmem:[%s165 + $0x138] sm:$0xff]
      %v212 = vld [vmem:[%s165 + $0x140] sm:$0xff]
      %v213 = vld [vmem:[%s165 + $0x148] sm:$0x3]
      %v214 = vld [vmem:[%s165 + $0x150] sm:$0xff]
      %v215 = vld [vmem:[%s165 + $0x158] sm:$0xff]
      %v216 = vld [vmem:[%s165 + $0x160] sm:$0x3]
      %v217 = vld [vmem:[%s165 + $0x168] sm:$0xff]
      %v218 = vld [vmem:[%s165 + $0x170] sm:$0xff]
      %v219 = vld [vmem:[%s165 + $0x178] sm:$0x3]
      %v220 = vld [vmem:[%s165 + $0x180] sm:$0xff]
      %v221 = vld [vmem:[%s165 + $0x188] sm:$0xff]
      %v222 = vld [vmem:[%s165 + $0x190] sm:$0x3]
      %v223 = vld [vmem:[%s165 + $0x198] sm:$0xff]
      %v224 = vld [vmem:[%s165 + $0x1a0] sm:$0xff]
      %v225 = vld [vmem:[%s165 + $0x1a8] sm:$0x3]
      %v226 = vpack.c.bf16 %v173, %v172
      %v227 = vpack.c.bf16 %v176, %v175
      %v228 = vpack.c.bf16 %v179, %v178
      %v229 = vpack.c.bf16 %v182, %v181
      %v230 = vpack.c.bf16 %v185, %v184
      %v231 = vpack.c.bf16 %v188, %v187
      %v232 = vpack.c.bf16 %v191, %v190
      %v233 = vpack.c.bf16 %v194, %v193
      %v234 = vpack.c.bf16 %v197, %v196
      %v235 = vpack.c.bf16 %v200, %v199
      %v236 = vpack.c.bf16 %v203, %v202
      %v237 = vpack.c.bf16 %v206, %v205
      %v238 = vpack.c.bf16 %v209, %v208
      %v239 = vpack.c.bf16 %v212, %v211
      %v240 = vpack.c.bf16 %v215, %v214
      %v241 = vpack.c.bf16 %v218, %v217
      %v242 = vpack.c.bf16 %v174, %v174
      %v243 = vpack.c.bf16 %v177, %v177
      %v244 = vpack.c.bf16 %v180, %v180
      %v245 = vpack.c.bf16 %v183, %v183
      %v246 = vpack.c.bf16 %v186, %v186
      %v247 = vpack.c.bf16 %v189, %v189
      %v248 = vpack.c.bf16 %v192, %v192
      %v249 = vpack.c.bf16 %v195, %v195
      %v250 = vpack.c.bf16 %v198, %v198
      %v251 = vpack.c.bf16 %v201, %v201
      %v252 = vpack.c.bf16 %v204, %v204
      %v253 = vpack.c.bf16 %v207, %v207
      %v254 = vpack.c.bf16 %v210, %v210
      %v255 = vpack.c.bf16 %v213, %v213
      %v256 = vpack.c.bf16 %v216, %v216
      %v257 = vpack.c.bf16 %v219, %v219
      %v258 = vpack.c.bf16 %v221, %v220
      %v259 = vpack.c.bf16 %v222, %v222
      %v260 = vpack.c.bf16 %v224, %v223
      %v261 = vpack.c.bf16 %v225, %v225
      %vm262 = vsmask.f32 7424
      %v264 = vshrl.u32 %v226, 16
      %v266 = vshll.u32 %v226, 16
      %v268 = vrot.slane %v266, 1
      %v269 = vor.u32 %v264, %v268
      %v271 = vshll.u32 %v242, 16
      %v273 = vrot.slane %v271, 1
      %v274 = vsel %vm262, %v269, %v273
      %v276 = vshrl.u32 %v227, 16
      %v278 = vshll.u32 %v227, 16
      %v280 = vrot.slane %v278, 1
      %v281 = vor.u32 %v276, %v280
      %v283 = vshll.u32 %v243, 16
      %v285 = vrot.slane %v283, 1
      %v286 = vsel %vm262, %v281, %v285
      %v288 = vshrl.u32 %v228, 16
      %v290 = vshll.u32 %v228, 16
      %v292 = vrot.slane %v290, 1
      %v293 = vor.u32 %v288, %v292
      %v295 = vshll.u32 %v244, 16
      %v297 = vrot.slane %v295, 1
      %v298 = vsel %vm262, %v293, %v297
      %v300 = vshrl.u32 %v229, 16
      %v302 = vshll.u32 %v229, 16
      %v304 = vrot.slane %v302, 1
      %v305 = vor.u32 %v300, %v304
      %v307 = vshll.u32 %v245, 16
      %v309 = vrot.slane %v307, 1
      %v310 = vsel %vm262, %v305, %v309
      %v312 = vshrl.u32 %v230, 16
      %v314 = vshll.u32 %v230, 16
      %v316 = vrot.slane %v314, 1
      %v317 = vor.u32 %v312, %v316
      %v319 = vshll.u32 %v246, 16
      %v321 = vrot.slane %v319, 1
      %v322 = vsel %vm262, %v317, %v321
      %v324 = vshrl.u32 %v231, 16
      %v326 = vshll.u32 %v231, 16
      %v328 = vrot.slane %v326, 1
      %v329 = vor.u32 %v324, %v328
      %v331 = vshll.u32 %v247, 16
      %v333 = vrot.slane %v331, 1
      %v334 = vsel %vm262, %v329, %v333
      %v336 = vshrl.u32 %v232, 16
      %v338 = vshll.u32 %v232, 16
      %v340 = vrot.slane %v338, 1
      %v341 = vor.u32 %v336, %v340
      %v343 = vshll.u32 %v248, 16
      %v345 = vrot.slane %v343, 1
      %v346 = vsel %vm262, %v341, %v345
      %v348 = vshrl.u32 %v233, 16
      %v350 = vshll.u32 %v233, 16
      %v352 = vrot.slane %v350, 1
      %v353 = vor.u32 %v348, %v352
      %v355 = vshll.u32 %v249, 16
      %v357 = vrot.slane %v355, 1
      %v358 = vsel %vm262, %v353, %v357
      %v360 = vshrl.u32 %v234, 16
      %v362 = vshll.u32 %v234, 16
      %v364 = vrot.slane %v362, 1
      %v365 = vor.u32 %v360, %v364
      %v367 = vshll.u32 %v250, 16
      %v369 = vrot.slane %v367, 1
      %v370 = vsel %vm262, %v365, %v369
      %v372 = vshrl.u32 %v235, 16
      %v374 = vshll.u32 %v235, 16
      %v376 = vrot.slane %v374, 1
      %v377 = vor.u32 %v372, %v376
      %v379 = vshll.u32 %v251, 16
      %v381 = vrot.slane %v379, 1
      %v382 = vsel %vm262, %v377, %v381
      %v384 = vshrl.u32 %v236, 16
      %v386 = vshll.u32 %v236, 16
      %v388 = vrot.slane %v386, 1
      %v389 = vor.u32 %v384, %v388
      %v391 = vshll.u32 %v252, 16
      %v393 = vrot.slane %v391, 1
      %v394 = vsel %vm262, %v389, %v393
      %v396 = vshrl.u32 %v237, 16
      %v398 = vshll.u32 %v237, 16
      %v400 = vrot.slane %v398, 1
      %v401 = vor.u32 %v396, %v400
      %v403 = vshll.u32 %v253, 16
      %v405 = vrot.slane %v403, 1
      %v406 = vsel %vm262, %v401, %v405
      %v408 = vshrl.u32 %v238, 16
      %v410 = vshll.u32 %v238, 16
      %v412 = vrot.slane %v410, 1
      %v413 = vor.u32 %v408, %v412
      %v415 = vshll.u32 %v254, 16
      %v417 = vrot.slane %v415, 1
      %v418 = vsel %vm262, %v413, %v417
      %v420 = vshrl.u32 %v239, 16
      %v422 = vshll.u32 %v239, 16
      %v424 = vrot.slane %v422, 1
      %v425 = vor.u32 %v420, %v424
      %v427 = vshll.u32 %v255, 16
      %v429 = vrot.slane %v427, 1
      %v430 = vsel %vm262, %v425, %v429
      %v432 = vshrl.u32 %v240, 16
      %v434 = vshll.u32 %v240, 16
      %v436 = vrot.slane %v434, 1
      %v437 = vor.u32 %v432, %v436
      %v439 = vshll.u32 %v256, 16
      %v441 = vrot.slane %v439, 1
      %v442 = vsel %vm262, %v437, %v441
      %v444 = vshrl.u32 %v241, 16
      %v446 = vshll.u32 %v241, 16
      %v448 = vrot.slane %v446, 1
      %v449 = vor.u32 %v444, %v448
      %v451 = vshll.u32 %v257, 16
      %v453 = vrot.slane %v451, 1
      %v454 = vsel %vm262, %v449, %v453
      %455 = vrot.lane.b32.xlu0 %v274, 4
      %v456 = vpop.permute.xlu0 %455
      %457 = vrot.lane.b32.xlu0 %v286, 4
      %v458 = vpop.permute.xlu0 %457
      %459 = vrot.lane.b32.xlu0 %v298, 4
      %v460 = vpop.permute.xlu0 %459
      %461 = vrot.lane.b32.xlu0 %v310, 4
      %v462 = vpop.permute.xlu0 %461
      %463 = vrot.lane.b32.xlu0 %v322, 4
      %v464 = vpop.permute.xlu0 %463
      %465 = vrot.lane.b32.xlu0 %v334, 4
      %v466 = vpop.permute.xlu0 %465
      %467 = vrot.lane.b32.xlu0 %v346, 4
      %v468 = vpop.permute.xlu0 %467
      %469 = vrot.lane.b32.xlu0 %v358, 4
      %v470 = vpop.permute.xlu0 %469
      %471 = vrot.lane.b32.xlu0 %v370, 4
      %v472 = vpop.permute.xlu0 %471
      %473 = vrot.lane.b32.xlu0 %v382, 4
      %v474 = vpop.permute.xlu0 %473
      %475 = vrot.lane.b32.xlu0 %v394, 4
      %v476 = vpop.permute.xlu0 %475
      %477 = vrot.lane.b32.xlu0 %v406, 4
      %v478 = vpop.permute.xlu0 %477
      %479 = vrot.lane.b32.xlu0 %v418, 4
      %v480 = vpop.permute.xlu0 %479
      %481 = vrot.lane.b32.xlu0 %v430, 4
      %v482 = vpop.permute.xlu0 %481
      %483 = vrot.lane.b32.xlu0 %v442, 4
      %v484 = vpop.permute.xlu0 %483
      %485 = vrot.lane.b32.xlu0 %v454, 4
      %v486 = vpop.permute.xlu0 %485
      %vm519 = vcmask 1046528
      %v520 = vrot.slane %v226, 1
      %v521 = vrot.slane %v242, 1
      %v522 = vsel %vm519, %v520, %v521
      %v523 = vrot.slane %v227, 1
      %v524 = vrot.slane %v243, 1
      %v525 = vsel %vm519, %v523, %v524
      %v526 = vrot.slane %v228, 1
      %v527 = vrot.slane %v244, 1
      %v528 = vsel %vm519, %v526, %v527
      %v529 = vrot.slane %v229, 1
      %v530 = vrot.slane %v245, 1
      %v531 = vsel %vm519, %v529, %v530
      %v532 = vrot.slane %v230, 1
      %v533 = vrot.slane %v246, 1
      %v534 = vsel %vm519, %v532, %v533
      %v535 = vrot.slane %v231, 1
      %v536 = vrot.slane %v247, 1
      %v537 = vsel %vm519, %v535, %v536
      %v538 = vrot.slane %v232, 1
      %v539 = vrot.slane %v248, 1
      %v540 = vsel %vm519, %v538, %v539
      %v541 = vrot.slane %v233, 1
      %v542 = vrot.slane %v249, 1
      %v543 = vsel %vm519, %v541, %v542
      %v544 = vrot.slane %v234, 1
      %v545 = vrot.slane %v250, 1
      %v546 = vsel %vm519, %v544, %v545
      %v547 = vrot.slane %v235, 1
      %v548 = vrot.slane %v251, 1
      %v549 = vsel %vm519, %v547, %v548
      %v550 = vrot.slane %v236, 1
      %v551 = vrot.slane %v252, 1
      %v552 = vsel %vm519, %v550, %v551
      %v553 = vrot.slane %v237, 1
      %v554 = vrot.slane %v253, 1
      %v555 = vsel %vm519, %v553, %v554
      %v556 = vrot.slane %v238, 1
      %v557 = vrot.slane %v254, 1
      %v558 = vsel %vm519, %v556, %v557
      %v559 = vrot.slane %v239, 1
      %v560 = vrot.slane %v255, 1
      %v561 = vsel %vm519, %v559, %v560
      %v562 = vrot.slane %v240, 1
      %v563 = vrot.slane %v256, 1
      %v564 = vsel %vm519, %v562, %v563
      %v565 = vrot.slane %v241, 1
      %v566 = vrot.slane %v257, 1
      %v567 = vsel %vm519, %v565, %v566
      %568 = vrot.lane.b32.xlu0 %v522, 8
      %v569 = vpop.permute.xlu0 %568
      %570 = vrot.lane.b32.xlu0 %v525, 8
      %v571 = vpop.permute.xlu0 %570
      %572 = vrot.lane.b32.xlu0 %v528, 8
      %v573 = vpop.permute.xlu0 %572
      %574 = vrot.lane.b32.xlu0 %v531, 8
      %v575 = vpop.permute.xlu0 %574
      %576 = vrot.lane.b32.xlu0 %v534, 8
      %v577 = vpop.permute.xlu0 %576
      %578 = vrot.lane.b32.xlu0 %v537, 8
      %v579 = vpop.permute.xlu0 %578
      %580 = vrot.lane.b32.xlu0 %v540, 8
      %v581 = vpop.permute.xlu0 %580
      %582 = vrot.lane.b32.xlu0 %v543, 8
      %v583 = vpop.permute.xlu0 %582
      %584 = vrot.lane.b32.xlu0 %v546, 8
      %v585 = vpop.permute.xlu0 %584
      %586 = vrot.lane.b32.xlu0 %v549, 8
      %v587 = vpop.permute.xlu0 %586
      %588 = vrot.lane.b32.xlu0 %v552, 8
      %v589 = vpop.permute.xlu0 %588
      %590 = vrot.lane.b32.xlu0 %v555, 8
      %v591 = vpop.permute.xlu0 %590
      %592 = vrot.lane.b32.xlu0 %v558, 8
      %v593 = vpop.permute.xlu0 %592
      %594 = vrot.lane.b32.xlu0 %v561, 8
      %v595 = vpop.permute.xlu0 %594
      %596 = vrot.lane.b32.xlu0 %v564, 8
      %v597 = vpop.permute.xlu0 %596
      %598 = vrot.lane.b32.xlu0 %v567, 8
      %v599 = vpop.permute.xlu0 %598
      %601 = vrot.lane.b32.xlu0 %v227, 12
      %v602 = vpop.permute.xlu0 %601
      %603 = vrot.lane.b32.xlu0 %v228, 12
      %v604 = vpop.permute.xlu0 %603
      %605 = vrot.lane.b32.xlu0 %v229, 12
      %v606 = vpop.permute.xlu0 %605
      %607 = vrot.lane.b32.xlu0 %v230, 12
      %v608 = vpop.permute.xlu0 %607
      %609 = vrot.lane.b32.xlu0 %v231, 12
      %v610 = vpop.permute.xlu0 %609
      %611 = vrot.lane.b32.xlu0 %v232, 12
      %v612 = vpop.permute.xlu0 %611
      %613 = vrot.lane.b32.xlu0 %v233, 12
      %v614 = vpop.permute.xlu0 %613
      %615 = vrot.lane.b32.xlu0 %v234, 12
      %v616 = vpop.permute.xlu0 %615
      %617 = vrot.lane.b32.xlu0 %v235, 12
      %v618 = vpop.permute.xlu0 %617
      %619 = vrot.lane.b32.xlu0 %v236, 12
      %v620 = vpop.permute.xlu0 %619
      %621 = vrot.lane.b32.xlu0 %v237, 12
      %v622 = vpop.permute.xlu0 %621
      %623 = vrot.lane.b32.xlu0 %v238, 12
      %v624 = vpop.permute.xlu0 %623
      %625 = vrot.lane.b32.xlu0 %v239, 12
      %v626 = vpop.permute.xlu0 %625
      %627 = vrot.lane.b32.xlu0 %v240, 12
      %v628 = vpop.permute.xlu0 %627
      %629 = vrot.lane.b32.xlu0 %v241, 12
      %v630 = vpop.permute.xlu0 %629
      %631 = vrot.lane.b32.xlu0 %v258, 12
      %v632 = vpop.permute.xlu0 %631
      %v634 = vshrl.u32 %v258, 16
      %v636 = vshll.u32 %v258, 16
      %v638 = vrot.slane %v636, 1
      %v639 = vor.u32 %v634, %v638
      %v641 = vshll.u32 %v259, 16
      %v643 = vrot.slane %v641, 1
      %v644 = vsel %vm262, %v639, %v643
      %645 = vrot.lane.b32.xlu0 %v286, 16
      %v646 = vpop.permute.xlu0 %645
      %647 = vrot.lane.b32.xlu0 %v298, 16
      %v648 = vpop.permute.xlu0 %647
      %649 = vrot.lane.b32.xlu0 %v310, 16
      %v650 = vpop.permute.xlu0 %649
      %651 = vrot.lane.b32.xlu0 %v322, 16
      %v652 = vpop.permute.xlu0 %651
      %653 = vrot.lane.b32.xlu0 %v334, 16
      %v654 = vpop.permute.xlu0 %653
      %655 = vrot.lane.b32.xlu0 %v346, 16
      %v656 = vpop.permute.xlu0 %655
      %657 = vrot.lane.b32.xlu0 %v358, 16
      %v658 = vpop.permute.xlu0 %657
      %659 = vrot.lane.b32.xlu0 %v370, 16
      %v660 = vpop.permute.xlu0 %659
      %661 = vrot.lane.b32.xlu0 %v382, 16
      %v662 = vpop.permute.xlu0 %661
      %663 = vrot.lane.b32.xlu0 %v394, 16
      %v664 = vpop.permute.xlu0 %663
      %665 = vrot.lane.b32.xlu0 %v406, 16
      %v666 = vpop.permute.xlu0 %665
      %667 = vrot.lane.b32.xlu0 %v418, 16
      %v668 = vpop.permute.xlu0 %667
      %669 = vrot.lane.b32.xlu0 %v430, 16
      %v670 = vpop.permute.xlu0 %669
      %671 = vrot.lane.b32.xlu0 %v442, 16
      %v672 = vpop.permute.xlu0 %671
      %673 = vrot.lane.b32.xlu0 %v454, 16
      %v674 = vpop.permute.xlu0 %673
      %675 = vrot.lane.b32.xlu0 %v644, 16
      %v676 = vpop.permute.xlu0 %675
      %v678 = vrot.slane %v258, 1
      %v679 = vrot.slane %v259, 1
      %v680 = vsel %vm519, %v678, %v679
      %681 = vrot.lane.b32.xlu0 %v525, 20
      %v682 = vpop.permute.xlu0 %681
      %683 = vrot.lane.b32.xlu0 %v528, 20
      %v684 = vpop.permute.xlu0 %683
      %685 = vrot.lane.b32.xlu0 %v531, 20
      %v686 = vpop.permute.xlu0 %685
      %687 = vrot.lane.b32.xlu0 %v534, 20
      %v688 = vpop.permute.xlu0 %687
      %689 = vrot.lane.b32.xlu0 %v537, 20
      %v690 = vpop.permute.xlu0 %689
      %691 = vrot.lane.b32.xlu0 %v540, 20
      %v692 = vpop.permute.xlu0 %691
      %693 = vrot.lane.b32.xlu0 %v543, 20
      %v694 = vpop.permute.xlu0 %693
      %695 = vrot.lane.b32.xlu0 %v546, 20
      %v696 = vpop.permute.xlu0 %695
      %697 = vrot.lane.b32.xlu0 %v549, 20
      %v698 = vpop.permute.xlu0 %697
      %699 = vrot.lane.b32.xlu0 %v552, 20
      %v700 = vpop.permute.xlu0 %699
      %701 = vrot.lane.b32.xlu0 %v555, 20
      %v702 = vpop.permute.xlu0 %701
      %703 = vrot.lane.b32.xlu0 %v558, 20
      %v704 = vpop.permute.xlu0 %703
      %705 = vrot.lane.b32.xlu0 %v561, 20
      %v706 = vpop.permute.xlu0 %705
      %707 = vrot.lane.b32.xlu0 %v564, 20
      %v708 = vpop.permute.xlu0 %707
      %709 = vrot.lane.b32.xlu0 %v567, 20
      %v710 = vpop.permute.xlu0 %709
      %711 = vrot.lane.b32.xlu0 %v680, 20
      %v712 = vpop.permute.xlu0 %711
      %714 = vrot.lane.b32.xlu0 %v228, 24
      %v715 = vpop.permute.xlu0 %714
      %716 = vrot.lane.b32.xlu0 %v229, 24
      %v717 = vpop.permute.xlu0 %716
      %718 = vrot.lane.b32.xlu0 %v230, 24
      %v719 = vpop.permute.xlu0 %718
      %720 = vrot.lane.b32.xlu0 %v231, 24
      %v721 = vpop.permute.xlu0 %720
      %722 = vrot.lane.b32.xlu0 %v232, 24
      %v723 = vpop.permute.xlu0 %722
      %724 = vrot.lane.b32.xlu0 %v233, 24
      %v725 = vpop.permute.xlu0 %724
      %726 = vrot.lane.b32.xlu0 %v234, 24
      %v727 = vpop.permute.xlu0 %726
      %728 = vrot.lane.b32.xlu0 %v235, 24
      %v729 = vpop.permute.xlu0 %728
      %730 = vrot.lane.b32.xlu0 %v236, 24
      %v731 = vpop.permute.xlu0 %730
      %732 = vrot.lane.b32.xlu0 %v237, 24
      %v733 = vpop.permute.xlu0 %732
      %734 = vrot.lane.b32.xlu0 %v238, 24
      %v735 = vpop.permute.xlu0 %734
      %736 = vrot.lane.b32.xlu0 %v239, 24
      %v737 = vpop.permute.xlu0 %736
      %738 = vrot.lane.b32.xlu0 %v240, 24
      %v739 = vpop.permute.xlu0 %738
      %740 = vrot.lane.b32.xlu0 %v241, 24
      %v741 = vpop.permute.xlu0 %740
      %742 = vrot.lane.b32.xlu0 %v258, 24
      %v743 = vpop.permute.xlu0 %742
      %744 = vrot.lane.b32.xlu0 %v260, 24
      %v745 = vpop.permute.xlu0 %744
      %v747 = vshrl.u32 %v260, 16
      %v749 = vshll.u32 %v260, 16
      %v751 = vrot.slane %v749, 1
      %v752 = vor.u32 %v747, %v751
      %v754 = vshll.u32 %v261, 16
      %v756 = vrot.slane %v754, 1
      %v757 = vsel %vm262, %v752, %v756
      %758 = vrot.lane.b32.xlu0 %v298, 28
      %v759 = vpop.permute.xlu0 %758
      %760 = vrot.lane.b32.xlu0 %v310, 28
      %v761 = vpop.permute.xlu0 %760
      %762 = vrot.lane.b32.xlu0 %v322, 28
      %v763 = vpop.permute.xlu0 %762
      %764 = vrot.lane.b32.xlu0 %v334, 28
      %v765 = vpop.permute.xlu0 %764
      %766 = vrot.lane.b32.xlu0 %v346, 28
      %v767 = vpop.permute.xlu0 %766
      %768 = vrot.lane.b32.xlu0 %v358, 28
      %v769 = vpop.permute.xlu0 %768
      %770 = vrot.lane.b32.xlu0 %v370, 28
      %v771 = vpop.permute.xlu0 %770
      %772 = vrot.lane.b32.xlu0 %v382, 28
      %v773 = vpop.permute.xlu0 %772
      %774 = vrot.lane.b32.xlu0 %v394, 28
      %v775 = vpop.permute.xlu0 %774
      %776 = vrot.lane.b32.xlu0 %v406, 28
      %v777 = vpop.permute.xlu0 %776
      %778 = vrot.lane.b32.xlu0 %v418, 28
      %v779 = vpop.permute.xlu0 %778
      %780 = vrot.lane.b32.xlu0 %v430, 28
      %v781 = vpop.permute.xlu0 %780
      %782 = vrot.lane.b32.xlu0 %v442, 28
      %v783 = vpop.permute.xlu0 %782
      %784 = vrot.lane.b32.xlu0 %v454, 28
      %v785 = vpop.permute.xlu0 %784
      %786 = vrot.lane.b32.xlu0 %v644, 28
      %v787 = vpop.permute.xlu0 %786
      %788 = vrot.lane.b32.xlu0 %v757, 28
      %v789 = vpop.permute.xlu0 %788
      %v791 = vrot.slane %v260, 1
      %v792 = vrot.slane %v261, 1
      %v793 = vsel %vm519, %v791, %v792
      %794 = vrot.lane.b32.xlu0 %v528, 32
      %v795 = vpop.permute.xlu0 %794
      %796 = vrot.lane.b32.xlu0 %v531, 32
      %v797 = vpop.permute.xlu0 %796
      %798 = vrot.lane.b32.xlu0 %v534, 32
      %v799 = vpop.permute.xlu0 %798
      %800 = vrot.lane.b32.xlu0 %v537, 32
      %v801 = vpop.permute.xlu0 %800
      %802 = vrot.lane.b32.xlu0 %v540, 32
      %v803 = vpop.permute.xlu0 %802
      %804 = vrot.lane.b32.xlu0 %v543, 32
      %v805 = vpop.permute.xlu0 %804
      %806 = vrot.lane.b32.xlu0 %v546, 32
      %v807 = vpop.permute.xlu0 %806
      %808 = vrot.lane.b32.xlu0 %v549, 32
      %v809 = vpop.permute.xlu0 %808
      %810 = vrot.lane.b32.xlu0 %v552, 32
      %v811 = vpop.permute.xlu0 %810
      %812 = vrot.lane.b32.xlu0 %v555, 32
      %v813 = vpop.permute.xlu0 %812
      %814 = vrot.lane.b32.xlu0 %v558, 32
      %v815 = vpop.permute.xlu0 %814
      %816 = vrot.lane.b32.xlu0 %v561, 32
      %v817 = vpop.permute.xlu0 %816
      %818 = vrot.lane.b32.xlu0 %v564, 32
      %v819 = vpop.permute.xlu0 %818
      %820 = vrot.lane.b32.xlu0 %v567, 32
      %v821 = vpop.permute.xlu0 %820
      %822 = vrot.lane.b32.xlu0 %v680, 32
      %v823 = vpop.permute.xlu0 %822
      %824 = vrot.lane.b32.xlu0 %v793, 32
      %v825 = vpop.permute.xlu0 %824
      %vm826 = vcmask 31744
      %v828 = vsel %vm826, %v226, %v456
      %v830 = vsel %vm826, %v227, %v458
      %v832 = vsel %vm826, %v228, %v460
      %v834 = vsel %vm826, %v229, %v462
      %v836 = vsel %vm826, %v230, %v464
      %v838 = vsel %vm826, %v231, %v466
      %v840 = vsel %vm826, %v232, %v468
      %v842 = vsel %vm826, %v233, %v470
      %v844 = vsel %vm826, %v234, %v472
      %v846 = vsel %vm826, %v235, %v474
      %v848 = vsel %vm826, %v236, %v476
      %v850 = vsel %vm826, %v237, %v478
      %v852 = vsel %vm826, %v238, %v480
      %v854 = vsel %vm826, %v239, %v482
      %v856 = vsel %vm826, %v240, %v484
      %v858 = vsel %vm826, %v241, %v486
      %vm859 = vcmask 64512
      %v861 = vsel %vm859, %v828, %v569
      %v863 = vsel %vm859, %v830, %v571
      %v865 = vsel %vm859, %v832, %v573
      %v867 = vsel %vm859, %v834, %v575
      %v869 = vsel %vm859, %v836, %v577
      %v871 = vsel %vm859, %v838, %v579
      %v873 = vsel %vm859, %v840, %v581
      %v875 = vsel %vm859, %v842, %v583
      %v877 = vsel %vm859, %v844, %v585
      %v879 = vsel %vm859, %v846, %v587
      %v881 = vsel %vm859, %v848, %v589
      %v883 = vsel %vm859, %v850, %v591
      %v885 = vsel %vm859, %v852, %v593
      %v887 = vsel %vm859, %v854, %v595
      %v889 = vsel %vm859, %v856, %v597
      %v891 = vsel %vm859, %v858, %v599
      %vm892 = vcmask 97280
      %v894 = vsel %vm892, %v861, %v602
      %v896 = vsel %vm892, %v863, %v604
      %v898 = vsel %vm892, %v865, %v606
      %v900 = vsel %vm892, %v867, %v608
      %v902 = vsel %vm892, %v869, %v610
      %v904 = vsel %vm892, %v871, %v612
      %v906 = vsel %vm892, %v873, %v614
      %v908 = vsel %vm892, %v875, %v616
      %v910 = vsel %vm892, %v877, %v618
      %v912 = vsel %vm892, %v879, %v620
      %v914 = vsel %vm892, %v881, %v622
      %v916 = vsel %vm892, %v883, %v624
      %v918 = vsel %vm892, %v885, %v626
      %v920 = vsel %vm892, %v887, %v628
      %v922 = vsel %vm892, %v889, %v630
      %v924 = vsel %vm892, %v891, %v632
      %vm925 = vcmask 130048
      %v927 = vsel %vm925, %v894, %v646
      %v929 = vsel %vm925, %v896, %v648
      %v931 = vsel %vm925, %v898, %v650
      %v933 = vsel %vm925, %v900, %v652
      %v935 = vsel %vm925, %v902, %v654
      %v937 = vsel %vm925, %v904, %v656
      %v939 = vsel %vm925, %v906, %v658
      %v941 = vsel %vm925, %v908, %v660
      %v943 = vsel %vm925, %v910, %v662
      %v945 = vsel %vm925, %v912, %v664
      %v947 = vsel %vm925, %v914, %v666
      %v949 = vsel %vm925, %v916, %v668
      %v951 = vsel %vm925, %v918, %v670
      %v953 = vsel %vm925, %v920, %v672
      %v955 = vsel %vm925, %v922, %v674
      %v957 = vsel %vm925, %v924, %v676
      %vm958 = vcmask 162816
      %v960 = vsel %vm958, %v927, %v682
      %v962 = vsel %vm958, %v929, %v684
      %v964 = vsel %vm958, %v931, %v686
      %v966 = vsel %vm958, %v933, %v688
      %v968 = vsel %vm958, %v935, %v690
      %v970 = vsel %vm958, %v937, %v692
      %v972 = vsel %vm958, %v939, %v694
      %v974 = vsel %vm958, %v941, %v696
      %v976 = vsel %vm958, %v943, %v698
      %v978 = vsel %vm958, %v945, %v700
      %v980 = vsel %vm958, %v947, %v702
      %v982 = vsel %vm958, %v949, %v704
      %v984 = vsel %vm958, %v951, %v706
      %v986 = vsel %vm958, %v953, %v708
      %v988 = vsel %vm958, %v955, %v710
      %v990 = vsel %vm958, %v957, %v712
      %vm991 = vcmask 195584
      %v993 = vsel %vm991, %v960, %v715
      %v995 = vsel %vm991, %v962, %v717
      %v997 = vsel %vm991, %v964, %v719
      %v999 = vsel %vm991, %v966, %v721
      %v1001 = vsel %vm991, %v968, %v723
      %v1003 = vsel %vm991, %v970, %v725
      %v1005 = vsel %vm991, %v972, %v727
      %v1007 = vsel %vm991, %v974, %v729
      %v1009 = vsel %vm991, %v976, %v731
      %v1011 = vsel %vm991, %v978, %v733
      %v1013 = vsel %vm991, %v980, %v735
      %v1015 = vsel %vm991, %v982, %v737
      %v1017 = vsel %vm991, %v984, %v739
      %v1019 = vsel %vm991, %v986, %v741
      %v1021 = vsel %vm991, %v988, %v743
      %v1023 = vsel %vm991, %v990, %v745
      %vm1024 = vcmask 228352
      %v1026 = vsel %vm1024, %v993, %v759
      %v1028 = vsel %vm1024, %v995, %v761
      %v1030 = vsel %vm1024, %v997, %v763
      %v1032 = vsel %vm1024, %v999, %v765
      %v1034 = vsel %vm1024, %v1001, %v767
      %v1036 = vsel %vm1024, %v1003, %v769
      %v1038 = vsel %vm1024, %v1005, %v771
      %v1040 = vsel %vm1024, %v1007, %v773
      %v1042 = vsel %vm1024, %v1009, %v775
      %v1044 = vsel %vm1024, %v1011, %v777
      %v1046 = vsel %vm1024, %v1013, %v779
      %v1048 = vsel %vm1024, %v1015, %v781
      %v1050 = vsel %vm1024, %v1017, %v783
      %v1052 = vsel %vm1024, %v1019, %v785
      %v1054 = vsel %vm1024, %v1021, %v787
      %v1056 = vsel %vm1024, %v1023, %v789
      %vm1057 = vcmask 261120
      %v1059 = vsel %vm1057, %v1026, %v795
      %v1061 = vsel %vm1057, %v1028, %v797
      %v1063 = vsel %vm1057, %v1030, %v799
      %v1065 = vsel %vm1057, %v1032, %v801
      %v1067 = vsel %vm1057, %v1034, %v803
      %v1069 = vsel %vm1057, %v1036, %v805
      %v1071 = vsel %vm1057, %v1038, %v807
      %v1073 = vsel %vm1057, %v1040, %v809
      %v1075 = vsel %vm1057, %v1042, %v811
      %v1077 = vsel %vm1057, %v1044, %v813
      %v1079 = vsel %vm1057, %v1046, %v815
      %v1081 = vsel %vm1057, %v1048, %v817
      %v1083 = vsel %vm1057, %v1050, %v819
      %v1085 = vsel %vm1057, %v1052, %v821
      %v1087 = vsel %vm1057, %v1054, %v823
      %v1089 = vsel %vm1057, %v1056, %v825
      %v1090 = vld [vmem:[%s1] sm:$0xf]
      %v1091 = vld [vmem:[%s1 + $0x4] sm:$0xf]
      %v1092 = vld [vmem:[%s1 + $0x8] sm:$0xf]
      %v1093 = vld [vmem:[%s1 + $0xc] sm:$0xf]
      %v1094 = vld [vmem:[%s1 + $0x10] sm:$0x3]
      %v1095 = vld [vmem:[%s2] sm:$0x1]
      %v1097 = vlaneseq
      %v1098 = vshrl.u32 %v1097, 7
      %v1099 = vsub.s32 0, %v1098
      %v1100 = vrot.slane %v1095, %v1099
      %v1107 = vunpack.c.l.b16 %v1090
      %v1108 = vunpack.c.l.b16 %v1091
      %v1109 = vunpack.c.l.b16 %v1092
      %v1110 = vunpack.c.l.b16 %v1093
      %v1111 = vunpack.c.l.b16 %v1094
      %v1112 = vpack.c.b16 %v1108, %v1107
      %v1113 = vpack.c.b16 %v1110, %v1109
      %v1114 = vpack.c.b16 %v1111, %v1111
      %vm1117 = vcmask 293888
      %v1118 = vsel %vm1117, %v1059, 0
      %v1120 = vsel %vm1117, %v1061, 0
      %v1122 = vsel %vm1117, %v1063, 0
      %v1124 = vsel %vm1117, %v1065, 0
      %v1126 = vsel %vm1117, %v1067, 0
      %v1128 = vsel %vm1117, %v1069, 0
      %v1130 = vsel %vm1117, %v1071, 0
      %v1132 = vsel %vm1117, %v1073, 0
      %v1134 = vsel %vm1117, %v1075, 0
      %v1136 = vsel %vm1117, %v1077, 0
      %v1138 = vsel %vm1117, %v1079, 0
      %v1140 = vsel %vm1117, %v1081, 0
      %v1142 = vsel %vm1117, %v1083, 0
      %v1144 = vsel %vm1117, %v1085, 0
      %v1146 = vsel %vm1117, %v1087, 0
      %v1148 = vsel %vm1117, %v1089, 0
      %vm1150 = vcmask 1041408
      %v1152 = vsel %vm1150, %v1114, 0
      %1154 = vmatprep.subr.bf16.mxu0 0
      %1155 = vmatpush1.bf16.msra.mxu0 %v1112
      %1156 = vmatprep.subr.bf16.mxu0 0
      %1157 = vmatpush1.bf16.msra.mxu0 %v1113
      %1158 = vmatprep.subr.bf16.mxu0 0
      %1159 = vmatpush1.bf16.msra.mxu0 %v1152
      %1160 = vmatprep.subr.bf16.mxu0 0
      %1161 = vmatpush1.bf16.msra.mxu0 0
      %1162 = vmatprep.subr.bf16.mxu0 0
      %1163 = vmatpush1.bf16.msra.mxu0 0
      %1164 = vmatprep.subr.bf16.mxu0 0
      %1165 = vmatpush1.bf16.msra.mxu0 0
      %1166 = vmatprep.subr.bf16.mxu0 0
      %1167 = vmatpush1.bf16.msra.mxu0 0
      %1168 = vmatprep.subr.bf16.mxu0 0
      %1169 = vmatpush1.bf16.msra.mxu0 0
      %1170 = vmatprep.subr.bf16.mxu0 0
      %1171 = vmatpush1.bf16.msra.mxu0 0
      %1172 = vmatprep.subr.bf16.mxu0 0
      %1173 = vmatpush1.bf16.msra.mxu0 0
      %1174 = vmatprep.subr.bf16.mxu0 0
      %1175 = vmatpush1.bf16.msra.mxu0 0
      %1176 = vmatprep.subr.bf16.mxu0 0
      %1177 = vmatpush1.bf16.msra.mxu0 0
      %1178 = vmatprep.subr.bf16.mxu0 0
      %1179 = vmatpush1.bf16.msra.mxu0 0
      %1180 = vmatprep.subr.bf16.mxu0 0
      %1181 = vmatpush1.bf16.msra.mxu0 0
      %1182 = vmatprep.subr.bf16.mxu0 0
      %1183 = vmatpush1.bf16.msra.mxu0 0
      %1184 = vmatprep.subr.bf16.mxu0 0
      %1185 = vmatpush1.bf16.msra.mxu0 0
      %1186 = vmatprep.mubr.bf16.mxu0 0
      %1187 = vmatmul.mubr.bf16.gmra.mrb[0].mxu0 %v1118
      %v1188 = vpop.f32.mrb[0].mxu0
      %v1189 = vadd.f32 %v1100, %v1188
      %v1190 = vpop.f32.mrb[0].mxu0
      %v1191 = vpop.f32.mrb[0].mxu0
      %v1192 = vadd.f32 %v1100, %v1191
      %v1193 = vpop.f32.mrb[0].mxu0
      %1194 = vmatprep.mubr.bf16.mxu0 0
      %1195 = vmatmul.mubr.bf16.gmra.mrb[0].mxu0 %v1120
      %v1196 = vpop.f32.mrb[0].mxu0
      %v1197 = vadd.f32 %v1100, %v1196
      %v1198 = vpop.f32.mrb[0].mxu0
      %v1199 = vpop.f32.mrb[0].mxu0
      %v1200 = vadd.f32 %v1100, %v1199
      %v1201 = vpop.f32.mrb[0].mxu0
      %1202 = vmatprep.mubr.bf16.mxu0 0
      %1203 = vmatmul.mubr.bf16.gmra.mrb[0].mxu0 %v1122
      %v1204 = vpop.f32.mrb[0].mxu0
      %v1205 = vadd.f32 %v1100, %v1204
      %v1206 = vpop.f32.mrb[0].mxu0
      %v1207 = vpop.f32.mrb[0].mxu0
      %v1208 = vadd.f32 %v1100, %v1207
      %v1209 = vpop.f32.mrb[0].mxu0
      %1210 = vmatprep.mubr.bf16.mxu0 0
      %1211 = vmatmul.mubr.bf16.gmra.mrb[0].mxu0 %v1124
      %v1212 = vpop.f32.mrb[0].mxu0
      %v1213 = vadd.f32 %v1100, %v1212
      %v1214 = vpop.f32.mrb[0].mxu0
      %v1215 = vpop.f32.mrb[0].mxu0
      %v1216 = vadd.f32 %v1100, %v1215
      %v1217 = vpop.f32.mrb[0].mxu0
      %1218 = vmatprep.mubr.bf16.mxu0 0
      %1219 = vmatmul.mubr.bf16.gmra.mrb[0].mxu0 %v1126
      %v1220 = vpop.f32.mrb[0].mxu0
      %v1221 = vadd.f32 %v1100, %v1220
      %v1222 = vpop.f32.mrb[0].mxu0
      %v1223 = vpop.f32.mrb[0].mxu0
      %v1224 = vadd.f32 %v1100, %v1223
      %v1225 = vpop.f32.mrb[0].mxu0
      %1226 = vmatprep.mubr.bf16.mxu0 0
      %1227 = vmatmul.mubr.bf16.gmra.mrb[0].mxu0 %v1128
      %v1228 = vpop.f32.mrb[0].mxu0
      %v1229 = vadd.f32 %v1100, %v1228
      %v1230 = vpop.f32.mrb[0].mxu0
      %v1231 = vpop.f32.mrb[0].mxu0
      %v1232 = vadd.f32 %v1100, %v1231
      %v1233 = vpop.f32.mrb[0].mxu0
      %1234 = vmatprep.mubr.bf16.mxu0 0
      %1235 = vmatmul.mubr.bf16.gmra.mrb[0].mxu0 %v1130
      %v1236 = vpop.f32.mrb[0].mxu0
      %v1237 = vadd.f32 %v1100, %v1236
      %v1238 = vpop.f32.mrb[0].mxu0
      %v1239 = vpop.f32.mrb[0].mxu0
      %v1240 = vadd.f32 %v1100, %v1239
      %v1241 = vpop.f32.mrb[0].mxu0
      %1242 = vmatprep.mubr.bf16.mxu0 0
      %1243 = vmatmul.mubr.bf16.gmra.mrb[0].mxu0 %v1132
      %v1244 = vpop.f32.mrb[0].mxu0
      %v1245 = vadd.f32 %v1100, %v1244
      %v1246 = vpop.f32.mrb[0].mxu0
      %v1247 = vpop.f32.mrb[0].mxu0
      %v1248 = vadd.f32 %v1100, %v1247
      %v1249 = vpop.f32.mrb[0].mxu0
      %1250 = vmatprep.mubr.bf16.mxu0 0
      %1251 = vmatmul.mubr.bf16.gmra.mrb[0].mxu0 %v1134
      %v1252 = vpop.f32.mrb[0].mxu0
      %v1253 = vadd.f32 %v1100, %v1252
      %v1254 = vpop.f32.mrb[0].mxu0
      %v1255 = vpop.f32.mrb[0].mxu0
      %v1256 = vadd.f32 %v1100, %v1255
      %v1257 = vpop.f32.mrb[0].mxu0
      %1258 = vmatprep.mubr.bf16.mxu0 0
      %1259 = vmatmul.mubr.bf16.gmra.mrb[0].mxu0 %v1136
      %v1260 = vpop.f32.mrb[0].mxu0
      %v1261 = vadd.f32 %v1100, %v1260
      %v1262 = vpop.f32.mrb[0].mxu0
      %v1263 = vpop.f32.mrb[0].mxu0
      %v1264 = vadd.f32 %v1100, %v1263
      %v1265 = vpop.f32.mrb[0].mxu0
      %1266 = vmatprep.mubr.bf16.mxu0 0
      %1267 = vmatmul.mubr.bf16.gmra.mrb[0].mxu0 %v1138
      %v1268 = vpop.f32.mrb[0].mxu0
      %v1269 = vadd.f32 %v1100, %v1268
      %v1270 = vpop.f32.mrb[0].mxu0
      %v1271 = vpop.f32.mrb[0].mxu0
      %v1272 = vadd.f32 %v1100, %v1271
      %v1273 = vpop.f32.mrb[0].mxu0
      %1274 = vmatprep.mubr.bf16.mxu0 0
      %1275 = vmatmul.mubr.bf16.gmra.mrb[0].mxu0 %v1140
      %v1276 = vpop.f32.mrb[0].mxu0
      %v1277 = vadd.f32 %v1100, %v1276
      %v1278 = vpop.f32.mrb[0].mxu0
      %v1279 = vpop.f32.mrb[0].mxu0
      %v1280 = vadd.f32 %v1100, %v1279
      %v1281 = vpop.f32.mrb[0].mxu0
      %1282 = vmatprep.mubr.bf16.mxu0 0
      %1283 = vmatmul.mubr.bf16.gmra.mrb[0].mxu0 %v1142
      %v1284 = vpop.f32.mrb[0].mxu0
      %v1285 = vadd.f32 %v1100, %v1284
      %v1286 = vpop.f32.mrb[0].mxu0
      %v1287 = vpop.f32.mrb[0].mxu0
      %v1288 = vadd.f32 %v1100, %v1287
      %v1289 = vpop.f32.mrb[0].mxu0
      %1290 = vmatprep.mubr.bf16.mxu0 0
      %1291 = vmatmul.mubr.bf16.gmra.mrb[0].mxu0 %v1144
      %v1292 = vpop.f32.mrb[0].mxu0
      %v1293 = vadd.f32 %v1100, %v1292
      %v1294 = vpop.f32.mrb[0].mxu0
      %v1295 = vpop.f32.mrb[0].mxu0
      %v1296 = vadd.f32 %v1100, %v1295
      %v1297 = vpop.f32.mrb[0].mxu0
      %1298 = vmatprep.mubr.bf16.mxu0 0
      %1299 = vmatmul.mubr.bf16.gmra.mrb[0].mxu0 %v1146
      %v1300 = vpop.f32.mrb[0].mxu0
      %v1301 = vadd.f32 %v1100, %v1300
      %v1302 = vpop.f32.mrb[0].mxu0
      %v1303 = vpop.f32.mrb[0].mxu0
      %v1304 = vadd.f32 %v1100, %v1303
      %v1305 = vpop.f32.mrb[0].mxu0
      %1306 = vmatprep.mubr.bf16.mxu0 0
      %1307 = vmatmul.mubr.bf16.gmra.mrb[0].mxu0 %v1148
      %v1308 = vpop.f32.mrb[0].mxu0
      %v1309 = vadd.f32 %v1100, %v1308
      %v1310 = vpop.f32.mrb[0].mxu0
      %v1311 = vpop.f32.mrb[0].mxu0
      %v1312 = vadd.f32 %v1100, %v1311
      %v1313 = vpop.f32.mrb[0].mxu0
      %1314 = vdwg.mxu0
      %v1315 = vmax.f32 %v1189, 0.0
      %v1316 = vmax.f32 %v1192, 0.0
      %v1317 = vmax.f32 %v1197, 0.0
      %v1318 = vmax.f32 %v1200, 0.0
      %v1319 = vmax.f32 %v1205, 0.0
      %v1320 = vmax.f32 %v1208, 0.0
      %v1321 = vmax.f32 %v1213, 0.0
      %v1322 = vmax.f32 %v1216, 0.0
      %v1323 = vmax.f32 %v1221, 0.0
      %v1324 = vmax.f32 %v1224, 0.0
      %v1325 = vmax.f32 %v1229, 0.0
      %v1326 = vmax.f32 %v1232, 0.0
      %v1327 = vmax.f32 %v1237, 0.0
      %v1328 = vmax.f32 %v1240, 0.0
      %v1329 = vmax.f32 %v1245, 0.0
      %v1330 = vmax.f32 %v1248, 0.0
      %v1331 = vmax.f32 %v1253, 0.0
      %v1332 = vmax.f32 %v1256, 0.0
      %v1333 = vmax.f32 %v1261, 0.0
      %v1334 = vmax.f32 %v1264, 0.0
      %v1335 = vmax.f32 %v1269, 0.0
      %v1336 = vmax.f32 %v1272, 0.0
      %v1337 = vmax.f32 %v1277, 0.0
      %v1338 = vmax.f32 %v1280, 0.0
      %v1339 = vmax.f32 %v1285, 0.0
      %v1340 = vmax.f32 %v1288, 0.0
      %v1341 = vmax.f32 %v1293, 0.0
      %v1342 = vmax.f32 %v1296, 0.0
      %v1343 = vmax.f32 %v1301, 0.0
      %v1344 = vmax.f32 %v1304, 0.0
      %v1345 = vmax.f32 %v1309, 0.0
      %v1346 = vmax.f32 %v1312, 0.0
      %1347 = vst.msk [vmem:[%s170] sm:$0xff] %vm1057, 0.0
      %1348 = vst.msk [vmem:[%s170 + $0x8] sm:$0xff] %vm1057, 0.0
      %vm1349 = vcmask 254976
      %1350 = vst.msk [vmem:[%s170 + $0x10] sm:$0x3] %vm1349, 0.0
      %1351 = vst.msk [vmem:[%s170 + $0x18] sm:$0xff] %vm1057, 0.0
      %1352 = vst.msk [vmem:[%s170 + $0x20] sm:$0xff] %vm1057, 0.0
      %1353 = vst.msk [vmem:[%s170 + $0x28] sm:$0x3] %vm1349, 0.0
      %1354 = vst.msk [vmem:[%s170 + $0x30] sm:$0xff] %vm1057, 0.0
      %1355 = vst.msk [vmem:[%s170 + $0x38] sm:$0xff] %vm1057, 0.0
      %1356 = vst.msk [vmem:[%s170 + $0x40] sm:$0x3] %vm1349, 0.0
      %1357 = vst.msk [vmem:[%s170 + $0x48] sm:$0xff] %vm1057, 0.0
      %1358 = vst.msk [vmem:[%s170 + $0x50] sm:$0xff] %vm1057, 0.0
      %1359 = vst.msk [vmem:[%s170 + $0x58] sm:$0x3] %vm1349, 0.0
      %1360 = vst.msk [vmem:[%s170 + $0x60] sm:$0xff] %vm1057, 0.0
      %1361 = vst.msk [vmem:[%s170 + $0x68] sm:$0xff] %vm1057, 0.0
      %1362 = vst.msk [vmem:[%s170 + $0x70] sm:$0x3] %vm1349, 0.0
      %1363 = vst.msk [vmem:[%s170 + $0x78] sm:$0xff] %vm1057, 0.0
      %1364 = vst.msk [vmem:[%s170 + $0x80] sm:$0xff] %vm1057, 0.0
      %1365 = vst.msk [vmem:[%s170 + $0x88] sm:$0x3] %vm1349, 0.0
      %1366 = vst.msk [vmem:[%s170 + $0x90] sm:$0xff] %vm1057, 0.0
      %1367 = vst.msk [vmem:[%s170 + $0x98] sm:$0xff] %vm1057, 0.0
      %1368 = vst.msk [vmem:[%s170 + $0xa0] sm:$0x3] %vm1349, 0.0
      %1369 = vst.msk [vmem:[%s170 + $0xa8] sm:$0xff] %vm1057, 0.0
      %1370 = vst.msk [vmem:[%s170 + $0xb0] sm:$0xff] %vm1057, 0.0
      %1371 = vst.msk [vmem:[%s170 + $0xb8] sm:$0x3] %vm1349, 0.0
      %1372 = vst.msk [vmem:[%s170 + $0xc0] sm:$0xff] %vm1057, 0.0
      %1373 = vst.msk [vmem:[%s170 + $0xc8] sm:$0xff] %vm1057, 0.0
      %1374 = vst.msk [vmem:[%s170 + $0xd0] sm:$0x3] %vm1349, 0.0
      %1375 = vst.msk [vmem:[%s170 + $0xd8] sm:$0xff] %vm1057, 0.0
      %1376 = vst.msk [vmem:[%s170 + $0xe0] sm:$0xff] %vm1057, 0.0
      %1377 = vst.msk [vmem:[%s170 + $0xe8] sm:$0x3] %vm1349, 0.0
      %1378 = vst.msk [vmem:[%s170 + $0xf0] sm:$0xff] %vm1057, 0.0
      %1379 = vst.msk [vmem:[%s170 + $0xf8] sm:$0xff] %vm1057, 0.0
      %1380 = vst.msk [vmem:[%s170 + $0x100] sm:$0x3] %vm1349, 0.0
      %1381 = vst.msk [vmem:[%s170 + $0x108] sm:$0xff] %vm1057, 0.0
      %1382 = vst.msk [vmem:[%s170 + $0x110] sm:$0xff] %vm1057, 0.0
      %1383 = vst.msk [vmem:[%s170 + $0x118] sm:$0x3] %vm1349, 0.0
      %1384 = vst.msk [vmem:[%s170 + $0x120] sm:$0xff] %vm1057, 0.0
      %1385 = vst.msk [vmem:[%s170 + $0x128] sm:$0xff] %vm1057, 0.0
      %1386 = vst.msk [vmem:[%s170 + $0x130] sm:$0x3] %vm1349, 0.0
      %1387 = vst.msk [vmem:[%s170 + $0x138] sm:$0xff] %vm1057, 0.0
      %1388 = vst.msk [vmem:[%s170 + $0x140] sm:$0xff] %vm1057, 0.0
      %1389 = vst.msk [vmem:[%s170 + $0x148] sm:$0x3] %vm1349, 0.0
      %1390 = vst.msk [vmem:[%s170 + $0x150] sm:$0xff] %vm1057, 0.0
      %1391 = vst.msk [vmem:[%s170 + $0x158] sm:$0xff] %vm1057, 0.0
      %1392 = vst.msk [vmem:[%s170 + $0x160] sm:$0x3] %vm1349, 0.0
      %1393 = vst.msk [vmem:[%s170 + $0x168] sm:$0xff] %vm1057, 0.0
      %1394 = vst.msk [vmem:[%s170 + $0x170] sm:$0xff] %vm1057, 0.0
      %1395 = vst.msk [vmem:[%s170 + $0x178] sm:$0x3] %vm1349, 0.0
      %1396 = vst.msk [vmem:[%s170 + $0x180] sm:$0xff] %vm1057, 0.0
      %1397 = vst.msk [vmem:[%s170 + $0x188] sm:$0xff] %vm1057, 0.0
      %1398 = vst.msk [vmem:[%s170 + $0x190] sm:$0x3] %vm1349, 0.0
      %1399 = vst.msk [vmem:[%s170 + $0x198] sm:$0xff] %vm1057, 0.0
      %1400 = vst.msk [vmem:[%s170 + $0x1a0] sm:$0xff] %vm1057, 0.0
      %1401 = vst.msk [vmem:[%s170 + $0x1a8] sm:$0x3] %vm1349, 0.0
      %s1402 = scalar_lea.vmem %s170, 24
      %1403 = vst.msk [vmem:[%s1402 + $0x1] sm:$0xff] %vm1057, %v1315
      %1404 = vst.msk [vmem:[%s1402 + $0x9] sm:$0xff] %vm1057, %v1316
      %1405 = vst.msk [vmem:[%s1402 + $0x19] sm:$0xff] %vm1057, %v1317
      %1406 = vst.msk [vmem:[%s1402 + $0x21] sm:$0xff] %vm1057, %v1318
      %1407 = vst.msk [vmem:[%s1402 + $0x31] sm:$0xff] %vm1057, %v1319
      %1408 = vst.msk [vmem:[%s1402 + $0x39] sm:$0xff] %vm1057, %v1320
      %1409 = vst.msk [vmem:[%s1402 + $0x49] sm:$0xff] %vm1057, %v1321
      %1410 = vst.msk [vmem:[%s1402 + $0x51] sm:$0xff] %vm1057, %v1322
      %1411 = vst.msk [vmem:[%s1402 + $0x61] sm:$0xff] %vm1057, %v1323
      %1412 = vst.msk [vmem:[%s1402 + $0x69] sm:$0xff] %vm1057, %v1324
      %1413 = vst.msk [vmem:[%s1402 + $0x79] sm:$0xff] %vm1057, %v1325
      %1414 = vst.msk [vmem:[%s1402 + $0x81] sm:$0xff] %vm1057, %v1326
      %1415 = vst.msk [vmem:[%s1402 + $0x91] sm:$0xff] %vm1057, %v1327
      %1416 = vst.msk [vmem:[%s1402 + $0x99] sm:$0xff] %vm1057, %v1328
      %1417 = vst.msk [vmem:[%s1402 + $0xa9] sm:$0xff] %vm1057, %v1329
      %1418 = vst.msk [vmem:[%s1402 + $0xb1] sm:$0xff] %vm1057, %v1330
      %1419 = vst.msk [vmem:[%s1402 + $0xc1] sm:$0xff] %vm1057, %v1331
      %1420 = vst.msk [vmem:[%s1402 + $0xc9] sm:$0xff] %vm1057, %v1332
      %1421 = vst.msk [vmem:[%s1402 + $0xd9] sm:$0xff] %vm1057, %v1333
      %1422 = vst.msk [vmem:[%s1402 + $0xe1] sm:$0xff] %vm1057, %v1334
      %1423 = vst.msk [vmem:[%s1402 + $0xf1] sm:$0xff] %vm1057, %v1335
      %1424 = vst.msk [vmem:[%s1402 + $0xf9] sm:$0xff] %vm1057, %v1336
      %1425 = vst.msk [vmem:[%s1402 + $0x109] sm:$0xff] %vm1057, %v1337
      %1426 = vst.msk [vmem:[%s1402 + $0x111] sm:$0xff] %vm1057, %v1338
      %1427 = vst.msk [vmem:[%s1402 + $0x121] sm:$0xff] %vm1057, %v1339
      %1428 = vst.msk [vmem:[%s1402 + $0x129] sm:$0xff] %vm1057, %v1340
      %1429 = vst.msk [vmem:[%s1402 + $0x139] sm:$0xff] %vm1057, %v1341
      %1430 = vst.msk [vmem:[%s1402 + $0x141] sm:$0xff] %vm1057, %v1342
      %1431 = vst.msk [vmem:[%s1402 + $0x151] sm:$0xff] %vm1057, %v1343
      %1432 = vst.msk [vmem:[%s1402 + $0x159] sm:$0xff] %vm1057, %v1344
      %1433 = vst.msk [vmem:[%s1402 + $0x169] sm:$0xff] %vm1057, %v1345
      %1434 = vst.msk [vmem:[%s1402 + $0x171] sm:$0xff] %vm1057, %v1346
      %p1435 = scmp.lt.s32.totalorder %s14, 1
      %s1436 = scalar_select %p1435, %s14, 1
      %s1437 = smul.addr %s1436, 54
      %s1438 = smul.addr %s1437, 8
      %s1439 = scalar_lea.vmem %s3, %s1438
      // Predicated region
      $region33: #{tpu_custom_call.1} parent=31 // pred_check
        %p1440 = pneg %p100
      $region34: #{tpu_custom_call.1} parent=31 // pred_check_branch
        %1442 = sbr.rel (%p1440) target = $region36
      $region35: #{tpu_custom_call.1} parent=31 // pred_region
        _
      $region36: #{tpu_custom_call.1} parent=31 // pred_fallthru
        _
    $region32: #{tpu_custom_call.1} parent=5 // pred_fallthru
      _
    %p1443 = scmp.le.s32.totalorder 2, %s9
    // Predicated region
    $region37: #{tpu_custom_call.1} parent=5 // pred_check
      %p1444 = pneg %p1443
    $region38: #{tpu_custom_call.1} parent=5 // pred_check_branch
      %1446 = sbr.rel (%p1444) target = $region40
    $region39: #{tpu_custom_call.1} parent=5 // pred_region
      %s1447 = ssub.s32 %s9, 2
      // Predicated region
      $region41: #{tpu_custom_call.1} parent=39 // pred_check
        %p1448 = pneg %p106
      $region42: #{tpu_custom_call.1} parent=39 // pred_check_branch
        %1450 = sbr.rel (%p1448) target = $region44
      $region43: #{tpu_custom_call.1} parent=39 // pred_region
        %p1451 = scmp.lt.s32.totalorder %s15, 1
        %s1452 = scalar_select %p1451, %s15, 1
        %s1453 = smul.addr %s1452, 54
        %s1454 = smul.addr %s1453, 8
        %s1455 = scalar_lea.vmem %s3, %s1454
      $region44: #{tpu_custom_call.1} parent=39 // pred_fallthru
        _
    $region40: #{tpu_custom_call.1} parent=5 // pred_fallthru
      _
  $region6: #{tpu_custom_call.1} parent=0 // loop_footer
    %s13 = sadd.s32 1, %s9
  $region7: #{tpu_custom_call.1} parent=0 // loop_footer_branch
    %8 = sbr.rel target = $region3
  $region8: #{tpu_custom_call.1} parent=0 // loop_exit
    _

</llo_original>
